<compile_context>
chip_gen: v6e
topology: v6e:2x2x1
jax: 0.10.0
libtpu: 0.0.40
codegen_flags: <defaults>
</compile_context>

<pallas_src>
import functools

import jax
import jax.numpy as jnp
from jax import lax
from jax.experimental import pallas as pl
from jax.experimental.pallas import tpu as pltpu


def _round_up(x, m):
    return ((x + m - 1) // m) * m


def _fold_rows(a, out_rows):
    """Sum (S,128) down to (out_rows,128); S % out_rows == 0.  Pure VPU adds."""
    s = a.shape[0]
    if s == out_rows:
        return a
    acc = a[0:out_rows]
    for k in range(1, s // out_rows):
        acc = acc + a[k * out_rows:(k + 1) * out_rows]
    return acc


def _combo_loss_kernel(logits_ref, tgt_ref, out_ref, *,
                       num_classes, tile_rows, strip_rows, hw,
                       tiles_per_split, needs_mask, unroll):
    # logits_ref : (C, tile_rows, 128)  logits (f32/bf16), pixels dense on sublanes+lanes
    # tgt_ref    : (tile_rows, 128)     int32 class indices
    # out_ref    : (4, 128)             f32 lane-partials [ce, intersection, p1-sum, tgt-sum]
    s = pl.program_id(1)      # pixel-split axis (occupies 2nd TensorCore when N == 1)
    t = pl.program_id(2)      # sequential reduction axis over pixel tiles

    n_strips = tile_rows // strip_rows
    acc_rows = min(8, strip_rows)

    @pl.when(t == 0)
    def _():
        out_ref[...] = jnp.zeros_like(out_ref)

    def _accumulate(masked):
        tile_start = (s * tiles_per_split + t) * (tile_rows * 128)

        def strip(i, carry):
            ce_a, in_a, p_a, t_a = carry
            r0 = pl.multiple_of(i * strip_rows, strip_rows)
            tgt = tgt_ref[pl.ds(r0, strip_rows), :]
            xs = [logits_ref[c, pl.ds(r0, strip_rows), :].astype(jnp.float32)
                  for c in range(num_classes)]

            # Class reduction on dense (strip_rows, 128) slabs, vreg-resident.
            m = xs[0]
            for c in range(1, num_classes):
                m = jnp.maximum(m, xs[c])

            se = jnp.exp(xs[0] - m)
            tgt_logit = xs[0]
            for c in range(1, num_classes):
                se = se + jnp.exp(xs[c] - m)
                tgt_logit = jnp.where(tgt == c, xs[c], tgt_logit)

            lse = m + jnp.log(se)              # logsumexp(x)
            ce = lse - tgt_logit               # -log softmax(x)[target]
            p1 = jnp.exp(xs[1] - lse)          # softmax(x)[class 1] (no reciprocal)
            tf = tgt.astype(jnp.float32)       # dice "mask" (reference semantics)

            if masked:
                # NaN-safe select: padded rows may hold uninitialized data.
                rows = r0 + lax.broadcasted_iota(jnp.int32, ce.shape, 0)
                lanes = lax.broadcasted_iota(jnp.int32, ce.shape, 1)
                valid = (tile_start + rows * 128 + lanes) < hw
                ce = jnp.where(valid, ce, 0.0)
                p1 = jnp.where(valid, p1, 0.0)
                tf = jnp.where(valid, tf, 0.0)

            return (ce_a + _fold_rows(ce, acc_rows),
                    in_a + _fold_rows(p1 * tf, acc_rows),
                    p_a + _fold_rows(p1, acc_rows),
                    t_a + _fold_rows(tf, acc_rows))

        zero = jnp.zeros((acc_rows, 128), jnp.float32)
        ce_a, in_a, p_a, t_a = lax.fori_loop(
            0, n_strips, strip, (zero, zero, zero, zero), unroll=unroll)

        # One small RMW on the VMEM-resident output block per grid step.
        out_ref[0:1, :] += jnp.sum(ce_a, axis=0, keepdims=True)
        out_ref[1:2, :] += jnp.sum(in_a, axis=0, keepdims=True)
        out_ref[2:3, :] += jnp.sum(p_a, axis=0, keepdims=True)
        out_ref[3:4, :] += jnp.sum(t_a, axis=0, keepdims=True)

    if needs_mask:
        tile_end = (s * tiles_per_split + t + 1) * (tile_rows * 128)
        has_pad = tile_end > hw

        @pl.when(jnp.logical_not(has_pad))
        def _():
            _accumulate(False)

        @pl.when(has_pad)
        def _():
            _accumulate(True)
    else:
        _accumulate(False)


def combo_loss(preds, targets, *, alpha=0.5, smooth=1e-6, tile_pixels=131072):
    """alpha * CrossEntropy(preds, targets) + (1-alpha) * DiceLoss(preds, targets).

    preds:   (N, C, H, W) float logits (f32 or bf16)
    targets: (N, H, W)    integer class indices
    """
    N, C, H, W = preds.shape
    HW = H * W
    n_pixels = N * HW

    # Free reshapes only (no transpose).  A pad is only materialized when HW is not
    # 128-aligned (rare for real image sizes).
    x = preds.reshape(N, C, HW)
    t = targets.reshape(N, HW).astype(jnp.int32)
    lane_pad = (-HW) % 128
    if lane_pad:
        x = jnp.pad(x, ((0, 0), (0, 0), (0, lane_pad)))
        t = jnp.pad(t, ((0, 0), (0, lane_pad)))
    rows_total = (HW + lane_pad) // 128
    x = x.reshape(N, C, rows_total, 128)
    t = t.reshape(N, rows_total, 128)

    # --- tile sizing -----------------------------------------------------------
    itemsize = jnp.dtype(preds.dtype).itemsize
    bytes_per_row = 128 * (C * itemsize + 4)            # logits + int32 targets
    vmem_budget = 16 * 1024 * 1024                      # double-buffered input budget
    vmem_cap_rows = max(8, (vmem_budget // (2 * bytes_per_row)) // 8 * 8)
    max_rows = max(8, min(tile_pixels // 128, vmem_cap_rows) // 8 * 8)

    if rows_total <= 32:
        # Tiny images: one exact block (no partial-block rows, no mask unless lane pad).
        tile_rows = rows_total
        strip_rows = rows_total
    else:
        # Fixed multiple-of-8 tile; trailing partial block masked in-kernel.
        tile_rows = min(max_rows, _round_up(rows_total, 8))
        strip_rows = 16 if tile_rows % 16 == 0 else 8

    n_strips = tile_rows // strip_rows
    unroll = True if n_strips <= 64 else 8
    num_tiles = pl.cdiv(rows_total, tile_rows)

    # v7x: with a single image, split the pixel axis across a size-2 parallel sub-axis
    # so both TensorCores get work.  No effect on v5e/v6e (1 TC).
    nsplit = 2 if (N == 1 and num_tiles >= 2) else 1
    tiles_per_split = pl.cdiv(num_tiles, nsplit)
    needs_mask = (nsplit * tiles_per_split * tile_rows * 128) != HW

    if nsplit * tiles_per_split == num_tiles:
        def _g(sp, tt):
            return sp * tiles_per_split + tt
    else:
        # Odd tile count with a split: clamp so no block window is fully out of
        # bounds; the in-kernel mask zeroes the duplicated tile's contribution.
        def _g(sp, tt):
            return jnp.minimum(sp * tiles_per_split + tt, num_tiles - 1)

    kernel = functools.partial(
        _combo_loss_kernel,
        num_classes=C, tile_rows=tile_rows, strip_rows=strip_rows, hw=HW,
        tiles_per_split=tiles_per_split, needs_mask=needs_mask, unroll=unroll)

    partials = pl.pallas_call(
        kernel,
        out_shape=jax.ShapeDtypeStruct((N, nsplit, 4, 128), jnp.float32),
        grid=(N, nsplit, tiles_per_split),
        in_specs=[
            pl.BlockSpec((pl.Squeezed(), C, tile_rows, 128),
                         lambda n, sp, tt: (n, 0, _g(sp, tt), 0)),
            pl.BlockSpec((pl.Squeezed(), tile_rows, 128),
                         lambda n, sp, tt: (n, _g(sp, tt), 0)),
        ],
        out_specs=pl.BlockSpec((pl.Squeezed(), pl.Squeezed(), 4, 128),
                               lambda n, sp, tt: (n, sp, 0, 0)),
        compiler_params=pltpu.CompilerParams(
            dimension_semantics=("parallel", "parallel", "arbitrary"),
            vmem_limit_bytes=32 * 1024 * 1024,
        ),
    )(x, t)

    # Tiny scalar epilogue in plain JAX: combine lane/row partials.
    sums = jnp.sum(partials, axis=(0, 1, 3))            # (4,)
    ce_mean = sums[0] / jnp.float32(n_pixels)
    dice = (2.0 * sums[1] + smooth) / (sums[2] + sums[3] + smooth)
    return alpha * ce_mean + (1.0 - alpha) * (1.0 - dice)


def combo_loss_ref(preds, targets, *, alpha=0.5, smooth=1e-6):
    """Pure-JAX reference matching the PyTorch ComboLoss."""
    preds = preds.astype(jnp.float32)
    log_sm = jax.nn.log_softmax(preds, axis=1)                        # (N,C,H,W)
    onehot = jax.nn.one_hot(targets, preds.shape[1], axis=1)          # (N,C,H,W)
    ce = -jnp.mean(jnp.sum(onehot * log_sm, axis=1))
    p1 = jax.nn.softmax(preds, axis=1)[:, 1, :, :]
    tf = targets.astype(jnp.float32)
    inter = jnp.sum(p1 * tf)
    union = jnp.sum(p1) + jnp.sum(tf)
    dice = (2.0 * inter + smooth) / (union + smooth)
    return alpha * ce + (1.0 - alpha) * (1.0 - dice)


if __name__ == "__main__":
    key = jax.random.PRNGKey(0)
    k1, k2 = jax.random.split(key)

    N, C, H, W = 2, 4, 16, 16
    preds = jax.random.normal(k1, (N, C, H, W), dtype=jnp.float32)
    targets = jax.random.bernoulli(k2, 0.4, (N, H, W)).astype(jnp.int32)

    loss = jax.block_until_ready(combo_loss(preds, targets))
    ref = combo_loss_ref(preds, targets)
    assert jnp.abs(loss - ref) < 2e-4, (loss, ref)

    print("KERNEL_OK")
</pallas_src>

<mosaic_0001>
module attributes {stable_mosaic.version = 11 : i64} {
  func.func @_combo_loss_kernel(%arg0: i32, %arg1: i32, %arg2: i32, %arg3: memref<1x4x2x128xf32, #tpu.memory_space<vmem>>, %arg4: memref<1x2x128xi32, #tpu.memory_space<vmem>>, %arg5: memref<1x1x4x128xf32, #tpu.memory_space<vmem>>) attributes {dimension_semantics = [#tpu.dimension_semantics<parallel>, #tpu.dimension_semantics<parallel>, #tpu.dimension_semantics<arbitrary>], iteration_bounds = array<i64: 2, 1, 1>, scalar_prefetch = 0 : i64, scratch_operands = 0 : i64, tpu.core_type = #tpu.core_type<tc>, window_params = [{transform_indices = @transform_0, window_bounds = array<i64: 1, 4, 2, 128>}, {transform_indices = @transform_1, window_bounds = array<i64: 1, 2, 128>}, {transform_indices = @transform_2, window_bounds = array<i64: 1, 1, 4, 128>}]} {
    %c0_i32 = arith.constant 0 : i32
    %0 = arith.cmpi eq, %arg2, %c0_i32 : i32
    %1 = arith.extui %0 : i1 to i32
    %c0_i32_0 = arith.constant 0 : i32
    %2 = arith.cmpi ne, %1, %c0_i32_0 : i32
    scf.if %2 {
      %cst_50 = arith.constant 0.000000e+00 : f32
      %87 = vector.broadcast %cst_50 : f32 to vector<4x128xf32>
      %c0_51 = arith.constant 0 : index
      %c0_52 = arith.constant 0 : index
      %c0_53 = arith.constant 0 : index
      %c0_54 = arith.constant 0 : index
      %88 = vector.load %arg5[%c0_51, %c0_52, %c0_53, %c0_54] : memref<1x1x4x128xf32, #tpu.memory_space<vmem>>, vector<1x1x4x128xf32>
      %89 = vector.shape_cast %88 : vector<1x1x4x128xf32> to vector<4x128xf32>
      %90 = vector.shape_cast %87 : vector<4x128xf32> to vector<1x1x4x128xf32>
      tpu.vector_store %arg5[%c0_51, %c0_52, %c0_53, %c0_54], %90 {strides = array<i32>} : memref<1x1x4x128xf32, #tpu.memory_space<vmem>>, vector<1x1x4x128xf32>,
    } else {
    }
    %cst = arith.constant 0.000000e+00 : f32
    %3 = vector.broadcast %cst : f32 to vector<2x128xf32>
    %c0_i32_1 = arith.constant 0 : i32
    %c2_i32 = arith.constant 2 : i32
    %4 = arith.muli %c0_i32_1, %c2_i32 : i32
    %5 = tpu.assume_multiple %4, 2 : i32
    %c0 = arith.constant 0 : index
    %6 = arith.index_cast %5 : i32 to index
    %c0_2 = arith.constant 0 : index
    %7 = vector.load %arg4[%c0, %6, %c0_2] : memref<1x2x128xi32, #tpu.memory_space<vmem>>, vector<1x2x128xi32>
    %8 = vector.shape_cast %7 : vector<1x2x128xi32> to vector<2x128xi32>
    %c0_3 = arith.constant 0 : index
    %c0_4 = arith.constant 0 : index
    %9 = arith.index_cast %5 : i32 to index
    %c0_5 = arith.constant 0 : index
    %10 = vector.load %arg3[%c0_3, %c0_4, %9, %c0_5] : memref<1x4x2x128xf32, #tpu.memory_space<vmem>>, vector<1x1x2x128xf32>
    %11 = vector.shape_cast %10 : vector<1x1x2x128xf32> to vector<2x128xf32>
    %c0_6 = arith.constant 0 : index
    %c1 = arith.constant 1 : index
    %12 = arith.index_cast %5 : i32 to index
    %c0_7 = arith.constant 0 : index
    %13 = vector.load %arg3[%c0_6, %c1, %12, %c0_7] : memref<1x4x2x128xf32, #tpu.memory_space<vmem>>, vector<1x1x2x128xf32>
    %14 = vector.shape_cast %13 : vector<1x1x2x128xf32> to vector<2x128xf32>
    %c0_8 = arith.constant 0 : index
    %c2 = arith.constant 2 : index
    %15 = arith.index_cast %5 : i32 to index
    %c0_9 = arith.constant 0 : index
    %16 = vector.load %arg3[%c0_8, %c2, %15, %c0_9] : memref<1x4x2x128xf32, #tpu.memory_space<vmem>>, vector<1x1x2x128xf32>
    %17 = vector.shape_cast %16 : vector<1x1x2x128xf32> to vector<2x128xf32>
    %c0_10 = arith.constant 0 : index
    %c3 = arith.constant 3 : index
    %18 = arith.index_cast %5 : i32 to index
    %c0_11 = arith.constant 0 : index
    %19 = vector.load %arg3[%c0_10, %c3, %18, %c0_11] : memref<1x4x2x128xf32, #tpu.memory_space<vmem>>, vector<1x1x2x128xf32>
    %20 = vector.shape_cast %19 : vector<1x1x2x128xf32> to vector<2x128xf32>
    %21 = arith.maximumf %11, %14 : vector<2x128xf32>
    %22 = arith.maximumf %21, %17 : vector<2x128xf32>
    %23 = arith.maximumf %22, %20 : vector<2x128xf32>
    %24 = arith.subf %11, %23 : vector<2x128xf32>
    %25 = math.exp %24 : vector<2x128xf32>
    %26 = arith.subf %14, %23 : vector<2x128xf32>
    %27 = math.exp %26 : vector<2x128xf32>
    %28 = arith.addf %25, %27 : vector<2x128xf32>
    %c1_i32 = arith.constant 1 : i32
    %29 = vector.broadcast %c1_i32 : i32 to vector<2x128xi32>
    %30 = arith.cmpi eq, %8, %29 : vector<2x128xi32>
    %31 = arith.select %30, %14, %11 : vector<2x128xi1>, vector<2x128xf32>
    %32 = arith.subf %17, %23 : vector<2x128xf32>
    %33 = math.exp %32 : vector<2x128xf32>
    %34 = arith.addf %28, %33 : vector<2x128xf32>
    %c2_i32_12 = arith.constant 2 : i32
    %35 = vector.broadcast %c2_i32_12 : i32 to vector<2x128xi32>
    %36 = arith.cmpi eq, %8, %35 : vector<2x128xi32>
    %37 = arith.select %36, %17, %31 : vector<2x128xi1>, vector<2x128xf32>
    %38 = arith.subf %20, %23 : vector<2x128xf32>
    %39 = math.exp %38 : vector<2x128xf32>
    %40 = arith.addf %34, %39 : vector<2x128xf32>
    %c3_i32 = arith.constant 3 : i32
    %41 = vector.broadcast %c3_i32 : i32 to vector<2x128xi32>
    %42 = arith.cmpi eq, %8, %41 : vector<2x128xi32>
    %43 = arith.select %42, %20, %37 : vector<2x128xi1>, vector<2x128xf32>
    %44 = math.log %40 : vector<2x128xf32>
    %45 = arith.addf %23, %44 : vector<2x128xf32>
    %46 = arith.subf %45, %43 : vector<2x128xf32>
    %47 = arith.subf %14, %45 : vector<2x128xf32>
    %48 = math.exp %47 : vector<2x128xf32>
    %49 = arith.sitofp %8 : vector<2x128xi32> to vector<2x128xf32>
    %50 = arith.addf %3, %46 : vector<2x128xf32>
    %51 = arith.mulf %48, %49 : vector<2x128xf32>
    %52 = arith.addf %3, %51 : vector<2x128xf32>
    %53 = arith.addf %3, %48 : vector<2x128xf32>
    %54 = arith.addf %3, %49 : vector<2x128xf32>
    %c1_i32_13 = arith.constant 1 : i32
    %c0_14 = arith.constant 0 : index
    %c0_15 = arith.constant 0 : index
    %c0_16 = arith.constant 0 : index
    %c0_17 = arith.constant 0 : index
    %55 = vector.load %arg5[%c0_14, %c0_15, %c0_16, %c0_17] : memref<1x1x4x128xf32, #tpu.memory_space<vmem>>, vector<1x1x1x128xf32>
    %56 = vector.shape_cast %55 : vector<1x1x1x128xf32> to vector<1x128xf32>
    %cst_18 = arith.constant dense<0.000000e+00> : vector<128xf32>
    %57 = vector.multi_reduction <add>, %50, %cst_18 [0] : vector<2x128xf32> to vector<128xf32>
    %58 = vector.shape_cast %57 : vector<128xf32> to vector<1x128xf32>
    %59 = arith.addf %56, %58 : vector<1x128xf32>
    %c0_19 = arith.constant 0 : index
    %c0_20 = arith.constant 0 : index
    %c0_21 = arith.constant 0 : index
    %c0_22 = arith.constant 0 : index
    %60 = vector.load %arg5[%c0_19, %c0_20, %c0_21, %c0_22] : memref<1x1x4x128xf32, #tpu.memory_space<vmem>>, vector<1x1x1x128xf32>
    %61 = vector.shape_cast %60 : vector<1x1x1x128xf32> to vector<1x128xf32>
    %62 = vector.shape_cast %59 : vector<1x128xf32> to vector<1x1x1x128xf32>
    tpu.vector_store %arg5[%c0_19, %c0_20, %c0_21, %c0_22], %62 {strides = array<i32>} : memref<1x1x4x128xf32, #tpu.memory_space<vmem>>, vector<1x1x1x128xf32>,
    %c0_23 = arith.constant 0 : index
    %c0_24 = arith.constant 0 : index
    %c1_25 = arith.constant 1 : index
    %c0_26 = arith.constant 0 : index
    %63 = vector.load %arg5[%c0_23, %c0_24, %c1_25, %c0_26] : memref<1x1x4x128xf32, #tpu.memory_space<vmem>>, vector<1x1x1x128xf32>
    %64 = vector.shape_cast %63 : vector<1x1x1x128xf32> to vector<1x128xf32>
    %cst_27 = arith.constant dense<0.000000e+00> : vector<128xf32>
    %65 = vector.multi_reduction <add>, %52, %cst_27 [0] : vector<2x128xf32> to vector<128xf32>
    %66 = vector.shape_cast %65 : vector<128xf32> to vector<1x128xf32>
    %67 = arith.addf %64, %66 : vector<1x128xf32>
    %c0_28 = arith.constant 0 : index
    %c0_29 = arith.constant 0 : index
    %c1_30 = arith.constant 1 : index
    %c0_31 = arith.constant 0 : index
    %68 = vector.load %arg5[%c0_28, %c0_29, %c1_30, %c0_31] : memref<1x1x4x128xf32, #tpu.memory_space<vmem>>, vector<1x1x1x128xf32>
    %69 = vector.shape_cast %68 : vector<1x1x1x128xf32> to vector<1x128xf32>
    %70 = vector.shape_cast %67 : vector<1x128xf32> to vector<1x1x1x128xf32>
    tpu.vector_store %arg5[%c0_28, %c0_29, %c1_30, %c0_31], %70 {strides = array<i32>} : memref<1x1x4x128xf32, #tpu.memory_space<vmem>>, vector<1x1x1x128xf32>,
    %c0_32 = arith.constant 0 : index
    %c0_33 = arith.constant 0 : index
    %c2_34 = arith.constant 2 : index
    %c0_35 = arith.constant 0 : index
    %71 = vector.load %arg5[%c0_32, %c0_33, %c2_34, %c0_35] : memref<1x1x4x128xf32, #tpu.memory_space<vmem>>, vector<1x1x1x128xf32>
    %72 = vector.shape_cast %71 : vector<1x1x1x128xf32> to vector<1x128xf32>
    %cst_36 = arith.constant dense<0.000000e+00> : vector<128xf32>
    %73 = vector.multi_reduction <add>, %53, %cst_36 [0] : vector<2x128xf32> to vector<128xf32>
    %74 = vector.shape_cast %73 : vector<128xf32> to vector<1x128xf32>
    %75 = arith.addf %72, %74 : vector<1x128xf32>
    %c0_37 = arith.constant 0 : index
    %c0_38 = arith.constant 0 : index
    %c2_39 = arith.constant 2 : index
    %c0_40 = arith.constant 0 : index
    %76 = vector.load %arg5[%c0_37, %c0_38, %c2_39, %c0_40] : memref<1x1x4x128xf32, #tpu.memory_space<vmem>>, vector<1x1x1x128xf32>
    %77 = vector.shape_cast %76 : vector<1x1x1x128xf32> to vector<1x128xf32>
    %78 = vector.shape_cast %75 : vector<1x128xf32> to vector<1x1x1x128xf32>
    tpu.vector_store %arg5[%c0_37, %c0_38, %c2_39, %c0_40], %78 {strides = array<i32>} : memref<1x1x4x128xf32, #tpu.memory_space<vmem>>, vector<1x1x1x128xf32>,
    %c0_41 = arith.constant 0 : index
    %c0_42 = arith.constant 0 : index
    %c3_43 = arith.constant 3 : index
    %c0_44 = arith.constant 0 : index
    %79 = vector.load %arg5[%c0_41, %c0_42, %c3_43, %c0_44] : memref<1x1x4x128xf32, #tpu.memory_space<vmem>>, vector<1x1x1x128xf32>
    %80 = vector.shape_cast %79 : vector<1x1x1x128xf32> to vector<1x128xf32>
    %cst_45 = arith.constant dense<0.000000e+00> : vector<128xf32>
    %81 = vector.multi_reduction <add>, %54, %cst_45 [0] : vector<2x128xf32> to vector<128xf32>
    %82 = vector.shape_cast %81 : vector<128xf32> to vector<1x128xf32>
    %83 = arith.addf %80, %82 : vector<1x128xf32>
    %c0_46 = arith.constant 0 : index
    %c0_47 = arith.constant 0 : index
    %c3_48 = arith.constant 3 : index
    %c0_49 = arith.constant 0 : index
    %84 = vector.load %arg5[%c0_46, %c0_47, %c3_48, %c0_49] : memref<1x1x4x128xf32, #tpu.memory_space<vmem>>, vector<1x1x1x128xf32>
    %85 = vector.shape_cast %84 : vector<1x1x1x128xf32> to vector<1x128xf32>
    %86 = vector.shape_cast %83 : vector<1x128xf32> to vector<1x1x1x128xf32>
    tpu.vector_store %arg5[%c0_46, %c0_47, %c3_48, %c0_49], %86 {strides = array<i32>} : memref<1x1x4x128xf32, #tpu.memory_space<vmem>>, vector<1x1x1x128xf32>,
    return
  }
  func.func @transform_0(%arg0: i32, %arg1: i32, %arg2: i32) -> (i32, i32, i32, i32) {
    %c1_i32 = arith.constant 1 : i32
    %0 = arith.muli %arg1, %c1_i32 : i32
    %1 = arith.addi %0, %arg2 : i32
    %c0_i32 = arith.constant 0 : i32
    %c0_i32_0 = arith.constant 0 : i32
    %c0_i32_1 = arith.constant 0 : i32
    return %arg0, %c0_i32, %1, %c0_i32_0 : i32, i32, i32, i32
  }
  func.func @transform_1(%arg0: i32, %arg1: i32, %arg2: i32) -> (i32, i32, i32) {
    %c1_i32 = arith.constant 1 : i32
    %0 = arith.muli %arg1, %c1_i32 : i32
    %1 = arith.addi %0, %arg2 : i32
    %c0_i32 = arith.constant 0 : i32
    %c0_i32_0 = arith.constant 0 : i32
    return %arg0, %1, %c0_i32 : i32, i32, i32
  }
  func.func @transform_2(%arg0: i32, %arg1: i32, %arg2: i32) -> (i32, i32, i32, i32) {
    %c0_i32 = arith.constant 0 : i32
    %c0_i32_0 = arith.constant 0 : i32
    %c0_i32_1 = arith.constant 0 : i32
    return %arg0, %arg1, %c0_i32, %c0_i32_0 : i32, i32, i32, i32
  }
}

</mosaic_0001>

<llo_original>
// kernel: tpu_custom_call.1
$region0: #{tpu_custom_call.1}
  #allocation0 [shape = 'u32[]', space=smem, size = 0x4, offset = 0x4, fixed_abs, tag = 'smem constant byte address 0x4 - core index']
  #allocation1 [shape = 'u32[144,128]{1,0:T(1,128)}', space=vmem, size = 0x12000, scoped, tag = 'internal scratch']
  %s0 = inlined_call_operand.hbm [shape: f32[2,4,2,128], index: 0, kind: input, shape index: {}]
  %s1 = inlined_call_operand.hbm [shape: s32[2,2,128], index: 1, kind: input, shape index: {}]
  %s2 = inlined_call_operand.hbm [shape: f32[2,1,4,128], index: 2, kind: output, shape index: {}]
  %s3 = sld [smem:[#allocation0]]
  $region53: #{tpu_custom_call.1} parent=0
    _
  %s5 = ssub.s32 1, %s3
  %s6 = scalar_select 0, %s5, %s3
  $region1: #{tpu_custom_call.1} parent=0
    #allocation2 [shape = 'u8[8192]{0}', space=vmem, size = 0x2000, scoped, tag = 'input window, operand 0']
    #allocation3 [shape = 's32[2]{0}', space=sflag, size = 0x8, scoped, tag = 'scoped memory for tpu_custom_call.1']
    #allocation4 [shape = 's32[2]{0}', space=sflag, size = 0x8, scoped, tag = 'scoped memory for tpu_custom_call.1']
    #allocation5 [shape = 'u8[2048]{0}', space=vmem, size = 0x800, scoped, tag = 'input window, operand 1']
    #allocation6 [shape = 's32[2]{0}', space=sflag, size = 0x8, scoped, tag = 'scoped memory for tpu_custom_call.1']
    #allocation7 [shape = 'u8[4096]{0}', space=vmem, size = 0x1000, scoped, tag = 'output window, operand 0']
    %7 = vsyncpa [#allocation3], 0
    %s8 = scalar_lea.sflag [#allocation3], 1
    %9 = vsyncpa %s8, 0
    %10 = vsyncpa [#allocation6], 0
    %s11 = scalar_lea.sflag [#allocation6], 1
    %12 = vsyncpa %s11, 0
    %13 = vsyncpa [#allocation4], 0
    %s14 = scalar_lea.sflag [#allocation4], 1
    %15 = vsyncpa %s14, 0
    loop: start=0, step=1, limit=4
    $region2: #{tpu_custom_call.1} parent=1 // loop_pre_header
      _
    $region3: #{tpu_custom_call.1} parent=1 // loop_header
      %s17 = sphi 0, %s21
      %p18 = scmp.ge.s32.totalorder %s17, 4
      %s24 = sphi 0, %s43
      %s25 = sphi 0, %s39
      %s26 = sphi 0, %s35
      %s27 = sphi 0, %s24
      %s28 = sphi 0, %s25
      %s29 = sphi 0, %s26
      %s30 = sphi 0, %s27
      %s31 = sphi 0, %s28
      %s32 = sphi 0, %s29
      %s50 = sphi 0, %s52
      %s53 = sphi 0, %s50
      %s54 = sphi 0, %s53
      %s70 = sphi 0, %s54
      %s80 = sphi 0, %s82
      %s83 = sphi 0, %s80
      %s84 = sphi 0, %s83
      %s100 = sphi 0, %s84
      %s108 = sphi 0, %s110
      %s111 = sphi 0, %s108
      %s112 = sphi 0, %s111
      %s128 = sphi 0, %s112
    $region4: #{tpu_custom_call.1} parent=1 // loop_header_branch
      %20 = sbr.rel (%p18) target = $region8
    $region5: #{tpu_custom_call.1} parent=1 // loop_body
      %s22 = ssub.s32 %s17, 1
      %s23 = ssub.s32 %s17, 2
      %s33 = sadd.s32 1, %s26
      %p34 = scmp.ge.s32.totalorder %s33, 1
      %s35 = scalar_select %p34, 0, %s33
      %s36 = sadd.s32 1, %s25
      %s37 = scalar_select %p34, %s36, %s25
      %p38 = scmp.ge.s32.totalorder %s37, 1
      %s39 = scalar_select %p38, 0, %s37
      %s40 = sadd.s32 1, %s24
      %s41 = scalar_select %p38, %s40, %s24
      %p42 = scmp.ge.s32.totalorder %s41, 2
      %s43 = scalar_select %p42, 0, %s41
      %s44 = sadd.s32 %s25, %s26
      %s45 = sadd.s32 %s39, %s35
      %s46 = ssub.s32 %s24, %s43
      %s47 = ssub.s32 %s44, %s45
      %s48 = sor.u32 %s46, %s47
      %p49 = scmp.eq.s32.totalorder %s48, 0
      %s51 = sadd.s32 %s50, 1
      %s52 = scalar_select %p49, %s50, %s51
      %p55 = pneg %p49
      %p56 = scmp.eq.s32.totalorder %s17, 1
      %p57 = por %p55, %p56
      %p58 = scmp.ne.s32.totalorder %s50, %s53
      %p59 = scmp.eq.s32.totalorder %s17, 0
      %p60 = por %p58, %p59
      %p61 = scmp.ne.s32.totalorder %s50, %s53
      %p62 = scmp.eq.s32.totalorder %s22, 1
      %p63 = por %p61, %p62
      %p64 = scmp.ne.s32.totalorder %s53, %s54
      %p65 = scmp.eq.s32.totalorder %s22, 0
      %p66 = por %p64, %p65
      %p67 = scmp.ne.s32.totalorder %s53, %s54
      %p68 = scmp.eq.s32.totalorder %s23, 1
      %p69 = por %p67, %p68
      %p71 = scmp.ne.s32.totalorder %s54, %s70
      %p72 = scmp.eq.s32.totalorder %s23, 0
      %p73 = por %p71, %p72
      %s74 = sadd.s32 %s25, %s26
      %s75 = sadd.s32 %s39, %s35
      %s76 = ssub.s32 %s24, %s43
      %s77 = ssub.s32 %s74, %s75
      %s78 = sor.u32 %s76, %s77
      %p79 = scmp.eq.s32.totalorder %s78, 0
      %s81 = sadd.s32 %s80, 1
      %s82 = scalar_select %p79, %s80, %s81
      %p85 = pneg %p79
      %p86 = scmp.eq.s32.totalorder %s17, 1
      %p87 = por %p85, %p86
      %p88 = scmp.ne.s32.totalorder %s80, %s83
      %p89 = scmp.eq.s32.totalorder %s17, 0
      %p90 = por %p88, %p89
      %p91 = scmp.ne.s32.totalorder %s80, %s83
      %p92 = scmp.eq.s32.totalorder %s22, 1
      %p93 = por %p91, %p92
      %p94 = scmp.ne.s32.totalorder %s83, %s84
      %p95 = scmp.eq.s32.totalorder %s22, 0
      %p96 = por %p94, %p95
      %p97 = scmp.ne.s32.totalorder %s83, %s84
      %p98 = scmp.eq.s32.totalorder %s23, 1
      %p99 = por %p97, %p98
      %p101 = scmp.ne.s32.totalorder %s84, %s100
      %p102 = scmp.eq.s32.totalorder %s23, 0
      %p103 = por %p101, %p102
      %s104 = ssub.s32 %s24, %s43
      %s105 = ssub.s32 %s25, %s39
      %s106 = sor.u32 %s104, %s105
      %p107 = scmp.eq.s32.totalorder %s106, 0
      %s109 = sadd.s32 %s108, 1
      %s110 = scalar_select %p107, %s108, %s109
      %p113 = pneg %p107
      %p114 = scmp.eq.s32.totalorder %s17, 1
      %p115 = por %p113, %p114
      %p116 = scmp.ne.s32.totalorder %s108, %s111
      %p117 = scmp.eq.s32.totalorder %s17, 0
      %p118 = por %p116, %p117
      %p119 = scmp.ne.s32.totalorder %s108, %s111
      %p120 = scmp.eq.s32.totalorder %s22, 1
      %p121 = por %p119, %p120
      %p122 = scmp.ne.s32.totalorder %s111, %s112
      %p123 = scmp.eq.s32.totalorder %s22, 0
      %p124 = por %p122, %p123
      %p125 = scmp.ne.s32.totalorder %s111, %s112
      %p126 = scmp.eq.s32.totalorder %s23, 1
      %p127 = por %p125, %p126
      %p129 = scmp.ne.s32.totalorder %s112, %s128
      %p130 = scmp.eq.s32.totalorder %s23, 0
      %p131 = por %p129, %p130
      %p132 = scmp.le.s32.totalorder 1, %s17
      %p133 = scmp.lt.s32.totalorder %s17, 3
      %p134 = pnand %p132, %p133
      %p135 = pneg %p134
      // Predicated region
      $region9: #{tpu_custom_call.1} parent=5 // pred_check
        _
      $region10: #{tpu_custom_call.1} parent=5 // pred_check_branch
        %137 = sbr.rel (%p134) target = $region12
      $region11: #{tpu_custom_call.1} parent=5 // pred_region
        %s138 = ssub.s32 %s17, 1
      $region12: #{tpu_custom_call.1} parent=5 // pred_fallthru
        _
      %p139 = scmp.lt.s32.totalorder %s17, 2
      // Predicated region
      $region13: #{tpu_custom_call.1} parent=5 // pred_check
        %p140 = pneg %p139
      $region14: #{tpu_custom_call.1} parent=5 // pred_check_branch
        %142 = sbr.rel (%p140) target = $region16
      $region15: #{tpu_custom_call.1} parent=5 // pred_region
        // Predicated region
        $region17: #{tpu_custom_call.1} parent=15 // pred_check
          %p143 = pneg %p60
        $region18: #{tpu_custom_call.1} parent=15 // pred_check_branch
          %145 = sbr.rel (%p143) target = $region20
        $region19: #{tpu_custom_call.1} parent=15 // pred_region
          %s146 = sand.u32 %s50, 1
          %s147 = scalar_lea.sflag [#allocation3], %s146
          %s148 = sand.u32 %s50, 1
          %s149 = smul.addr %s148, 8
          %s150 = scalar_lea.vmem [#allocation2], %s149
          %s151 = sadd.s32 %s25, %s26
          %s153 = ssub.s32 128, 128
          %154 = vsyncadd %s147, %s153
          %s155 = smul.addr %s24, 4
          %s156 = sadd.s32 %s151, %s155
          %s157 = smul.addr %s156, 32
          %s158 = scalar_lea.hbm %s0, %s157
          %s159 = sshll.u32 %s150, 4
          %s160 = int_to_ptr.vmem [resolvable:$true] %s159
          %165 = dma.hbm_to_vmem [thread:$0]  %s158, 128, %s160, %s147, 32, 32, 2
        $region20: #{tpu_custom_call.1} parent=15 // pred_fallthru
          _
        // Predicated region
        $region21: #{tpu_custom_call.1} parent=15 // pred_check
          %p166 = pneg %p90
        $region22: #{tpu_custom_call.1} parent=15 // pred_check_branch
          %168 = sbr.rel (%p166) target = $region24
        $region23: #{tpu_custom_call.1} parent=15 // pred_region
          %s169 = sand.u32 %s80, 1
          %s170 = scalar_lea.sflag [#allocation6], %s169
          %s171 = sand.u32 %s80, 1
          %s172 = smul.addr %s171, 2
          %s173 = scalar_lea.vmem [#allocation5], %s172
          %s174 = sadd.s32 %s25, %s26
          %s176 = ssub.s32 32, 32
          %177 = vsyncadd %s170, %s176
          %s178 = sadd.s32 %s174, %s24
          %s179 = smul.addr %s178, 32
          %s180 = scalar_lea.hbm %s1, %s179
          %s182 = sshll.u32 %s173, 4
          %s183 = int_to_ptr.vmem [resolvable:$true] %s182
          %185 = dma.hbm_to_vmem [thread:$0]  %s180, 32, %s183, %s170
        $region24: #{tpu_custom_call.1} parent=15 // pred_fallthru
          _
      $region16: #{tpu_custom_call.1} parent=5 // pred_fallthru
        _
      %p186 = scmp.le.s32.totalorder 1, %s17
      %p187 = scmp.lt.s32.totalorder %s17, 3
      %p188 = pnand %p186, %p187
      %p189 = pneg %p188
      // Predicated region
      $region25: #{tpu_custom_call.1} parent=5 // pred_check
        _
      $region26: #{tpu_custom_call.1} parent=5 // pred_check_branch
        %191 = sbr.rel (%p188) target = $region28
      $region27: #{tpu_custom_call.1} parent=5 // pred_region
        %s192 = ssub.s32 %s17, 1
        %s193 = sand.u32 %s53, 1
        %s194 = scalar_lea.sflag [#allocation3], %s193
        %s195 = sand.u32 %s53, 1
        %s196 = smul.addr %s195, 8
        %s197 = scalar_lea.vmem [#allocation2], %s196
        // Predicated region
        $region29: #{tpu_custom_call.1} parent=27 // pred_check
          %p198 = pneg %p66
        $region30: #{tpu_custom_call.1} parent=27 // pred_check_branch
          %200 = sbr.rel (%p198) target = $region32
        $region31: #{tpu_custom_call.1} parent=27 // pred_region
          %201 = dma.done %s194, 128
        $region32: #{tpu_custom_call.1} parent=27 // pred_fallthru
          _
        %s202 = sand.u32 %s83, 1
        %s203 = scalar_lea.sflag [#allocation6], %s202
        %s204 = sand.u32 %s83, 1
        %s205 = smul.addr %s204, 2
        %s206 = scalar_lea.vmem [#allocation5], %s205
        // Predicated region
        $region33: #{tpu_custom_call.1} parent=27 // pred_check
          %p207 = pneg %p96
        $region34: #{tpu_custom_call.1} parent=27 // pred_check_branch
          %209 = sbr.rel (%p207) target = $region36
        $region35: #{tpu_custom_call.1} parent=27 // pred_region
          %210 = dma.done %s203, 32
        $region36: #{tpu_custom_call.1} parent=27 // pred_fallthru
          _
        %s211 = sand.u32 %s53, 1
        %s212 = scalar_lea.sflag [#allocation3], %s211
        %s213 = sand.u32 %s53, 1
        %s214 = smul.addr %s213, 8
        %s215 = scalar_lea.vmem [#allocation2], %s214
        %p216 = pneg %p66
        %p217 = pneg %p63
        %s218 = sand.u32 %s83, 1
        %s219 = scalar_lea.sflag [#allocation6], %s218
        %s220 = sand.u32 %s83, 1
        %s221 = smul.addr %s220, 2
        %s222 = scalar_lea.vmem [#allocation5], %s221
        %p223 = pneg %p96
        %p224 = pneg %p93
        %p225 = pneg %p124
        %p226 = pneg %p121
        %s227 = sand.u32 %s111, 1
        %s228 = scalar_lea.sflag [#allocation4], %s227
        %s229 = sand.u32 %s111, 1
        %s230 = smul.addr %s229, 4
        %s231 = scalar_lea.vmem [#allocation7], %s230
        %s232 = sadd.s32 %s28, %s29
        %s233 = sadd.s32 %s28, %s29
        %p234 = scmp.eq.s32.totalorder %s29, 0
        // Predicated region
        $region37: #{tpu_custom_call.1} parent=27 // pred_check
          %p235 = pneg %p234
        $region38: #{tpu_custom_call.1} parent=27 // pred_check_branch
          %237 = sbr.rel (%p235) target = $region40
        $region39: #{tpu_custom_call.1} parent=27 // pred_region
          %238 = vst [vmem:[%s231] sm:$0xf] 0.0
        $region40: #{tpu_custom_call.1} parent=27 // pred_fallthru
          _
        %v239 = vld [vmem:[%s206] sm:$0x3]
        %v240 = vld [vmem:[%s197] sm:$0x3]
        %s241 = sadd.s32 0, 2
        %s242 = scalar_lea.vmem %s197, %s241 [#allocation2]
        %v243 = vld [vmem:[%s242] sm:$0x3]
        %s244 = sadd.s32 0, 4
        %s245 = scalar_lea.vmem %s197, %s244 [#allocation2]
        %v246 = vld [vmem:[%s245] sm:$0x3]
        %s247 = sadd.s32 0, 6
        %s248 = scalar_lea.vmem %s197, %s247 [#allocation2]
        %v249 = vld [vmem:[%s248] sm:$0x3]
        %v250 = vmax.f32 %v240, %v243
        %v251 = vmax.f32 %v250, %v246
        %v252 = vmax.f32 %v251, %v249
        %v253 = vsub.f32 %v240, %v252
        %v254 = vmul.f32 %v253, 1.442695
        %v255 = vpow.pop %v254
        %v256 = vsub.f32 %v243, %v252
        %v257 = vmul.f32 %v256, 1.442695
        %v258 = vpow.pop %v257
        %v259 = vadd.f32 %v255, %v258
        %vm260 = vcmp.eq.s32.totalorder %v239, 1
        %v261 = vsel %vm260, %v243, %v240
        %v262 = vsub.f32 %v246, %v252
        %v263 = vmul.f32 %v262, 1.442695
        %v264 = vpow.pop %v263
        %v265 = vadd.f32 %v259, %v264
        %vm266 = vcmp.eq.s32.totalorder %v239, 2
        %v267 = vsel %vm266, %v246, %v261
        %v268 = vsub.f32 %v249, %v252
        %v269 = vmul.f32 %v268, 1.442695
        %v270 = vpow.pop %v269
        %v271 = vadd.f32 %v265, %v270
        %vm272 = vcmp.eq.s32.totalorder %v239, 3
        %v273 = vsel %vm272, %v249, %v267
        %v274 = vlog2.pop %v271
        %v275 = vmul.f32 %v274, 0.6931472
        %v276 = vadd.f32 %v252, %v275
        %v277 = vsub.f32 %v276, %v273
        %v278 = vsub.f32 %v243, %v276
        %v279 = vmul.f32 %v278, 1.442695
        %v280 = vpow.pop %v279
        %v281 = vcvt.s32.f32 %v239
        %v282 = vadd.f32 %v277, 0.0
        %v283 = vmul.f32 %v280, %v281
        %v284 = vadd.f32 %v283, 0.0
        %v285 = vadd.f32 %v280, 0.0
        %v286 = vadd.f32 %v281, 0.0
        %v287 = vld [vmem:[%s231] sm:$0x1]
        %vm288 = vcmask 1041408
        %v289 = vsel %vm288, %v282, 0.0
        %v290 = vrot.slane %v289, 4
        %v291 = vadd.f32 %v289, %v290
        %v292 = vrot.slane %v291, 2
        %v293 = vadd.f32 %v291, %v292
        %v294 = vrot.slane %v293, 1
        %v295 = vadd.f32 %v293, %v294
        %v296 = vadd.f32 %v287, %v295
        %297 = vst [vmem:[%s231] sm:$0x1] %v296
        %v298 = vld [vmem:[%s231 + $0x1] sm:$0x1]
        %v299 = vsel %vm288, %v284, 0.0
        %v300 = vrot.slane %v299, 4
        %v301 = vadd.f32 %v299, %v300
        %v302 = vrot.slane %v301, 2
        %v303 = vadd.f32 %v301, %v302
        %v304 = vrot.slane %v303, 1
        %v305 = vadd.f32 %v303, %v304
        %v306 = vadd.f32 %v298, %v305
        %307 = vst [vmem:[%s231 + $0x1] sm:$0x1] %v306
        %v308 = vld [vmem:[%s231 + $0x2] sm:$0x1]
        %v309 = vsel %vm288, %v285, 0.0
        %v310 = vrot.slane %v309, 4
        %v311 = vadd.f32 %v309, %v310
        %v312 = vrot.slane %v311, 2
        %v313 = vadd.f32 %v311, %v312
        %v314 = vrot.slane %v313, 1
        %v315 = vadd.f32 %v313, %v314
        %v316 = vadd.f32 %v308, %v315
        %317 = vst [vmem:[%s231 + $0x2] sm:$0x1] %v316
        %v318 = vld [vmem:[%s231 + $0x3] sm:$0x1]
        %v319 = vsel %vm288, %v286, 0.0
        %v320 = vrot.slane %v319, 4
        %v321 = vadd.f32 %v319, %v320
        %v322 = vrot.slane %v321, 2
        %v323 = vadd.f32 %v321, %v322
        %v324 = vrot.slane %v323, 1
        %v325 = vadd.f32 %v323, %v324
        %v326 = vadd.f32 %v318, %v325
        %327 = vst [vmem:[%s231 + $0x3] sm:$0x1] %v326
        %s328 = sand.u32 %s111, 1
        %s329 = scalar_lea.sflag [#allocation4], %s328
        %s330 = sand.u32 %s111, 1
        %s331 = smul.addr %s330, 4
        %s332 = scalar_lea.vmem [#allocation7], %s331
        // Predicated region
        $region41: #{tpu_custom_call.1} parent=27 // pred_check
          %p333 = pneg %p121
        $region42: #{tpu_custom_call.1} parent=27 // pred_check_branch
          %335 = sbr.rel (%p333) target = $region44
        $region43: #{tpu_custom_call.1} parent=27 // pred_region
          %s337 = ssub.s32 64, 64
          %338 = vsyncadd %s329, %s337
          %s339 = sadd.s32 %s28, %s27
          %s340 = smul.addr %s339, 64
          %s341 = scalar_lea.hbm %s2, %s340
          %s343 = sshll.u32 %s332, 4
          %s344 = int_to_ptr.vmem [resolvable:$true] %s343
          %346 = dma.vmem_to_hbm [thread:$0]  %s344, 64, %s341, %s329
        $region44: #{tpu_custom_call.1} parent=27 // pred_fallthru
          _
      $region28: #{tpu_custom_call.1} parent=5 // pred_fallthru
        _
      %p347 = scmp.le.s32.totalorder 2, %s17
      // Predicated region
      $region45: #{tpu_custom_call.1} parent=5 // pred_check
        %p348 = pneg %p347
      $region46: #{tpu_custom_call.1} parent=5 // pred_check_branch
        %350 = sbr.rel (%p348) target = $region48
      $region47: #{tpu_custom_call.1} parent=5 // pred_region
        %s351 = ssub.s32 %s17, 2
        // Predicated region
        $region49: #{tpu_custom_call.1} parent=47 // pred_check
          %p352 = pneg %p127
        $region50: #{tpu_custom_call.1} parent=47 // pred_check_branch
          %354 = sbr.rel (%p352) target = $region52
        $region51: #{tpu_custom_call.1} parent=47 // pred_region
          %s355 = sand.u32 %s112, 1
          %s356 = scalar_lea.sflag [#allocation4], %s355
          %s357 = sand.u32 %s112, 1
          %s358 = smul.addr %s357, 4
          %s359 = scalar_lea.vmem [#allocation7], %s358
          %360 = dma.done %s356, 64
        $region52: #{tpu_custom_call.1} parent=47 // pred_fallthru
          _
      $region48: #{tpu_custom_call.1} parent=5 // pred_fallthru
        _
    $region6: #{tpu_custom_call.1} parent=1 // loop_footer
      %s21 = sadd.s32 1, %s17
    $region7: #{tpu_custom_call.1} parent=1 // loop_footer_branch
      %16 = sbr.rel target = $region3
    $region8: #{tpu_custom_call.1} parent=1 // loop_exit
      _
    %361 = vsyncpa [#allocation3], 1
    %s362 = scalar_lea.sflag [#allocation3], 1
    %363 = vsyncpa %s362, 1
    %364 = vsyncpa [#allocation6], 1
    %s365 = scalar_lea.sflag [#allocation6], 1
    %366 = vsyncpa %s365, 1
    %367 = vsyncpa [#allocation4], 1
    %s368 = scalar_lea.sflag [#allocation4], 1
    %369 = vsyncpa %s368, 1

</llo_original>
